<compile_context>
chip_gen: v5e
topology: v5e:2x2
jax: 0.10.0
libtpu: 0.0.40
codegen_flags: <defaults>
</compile_context>

<pallas_src>
import functools

import jax
import jax.numpy as jnp
from jax.experimental import pallas as pl
from jax.experimental.pallas import tpu as pltpu


def _round_up(v: int, m: int) -> int:
    return (v + m - 1) // m * m


def prepare_linear_params(weight, bias, *, param_dtype=None):
    """One-time parameter prep (run at init, NOT in the per-call path).

    weight: (emb_dim, lstm_hidden)  -- torch nn.Linear layout
    bias:   (emb_dim,)

    Returns:
      w_t: (lstm_hidden, E_pad)  lane-dense, optionally cast to param_dtype
      b2d: (1, E_pad) float32    (f32 epilogue)
    E_pad is emb_dim rounded up to a multiple of 128; padded columns are zero.
    """
    E, H = weight.shape
    E_pad = _round_up(E, 128)
    if E_pad != E:
        weight = jnp.pad(weight, ((0, E_pad - E), (0, 0)))
        bias = jnp.pad(bias, (0, E_pad - E))
    w_t = jnp.transpose(weight)                        # (H, E_pad), lane-dense N
    if param_dtype is not None:
        w_t = w_t.astype(param_dtype)
    b2d = bias.reshape(1, E_pad).astype(jnp.float32)   # f32 bias for the epilogue
    return w_t, b2d


def _linear_kernel(x_ref, w_ref, b_ref, o_ref):
    # x_ref: (tm, H), w_ref: (H, tn), b_ref: (1, tn) f32, o_ref: (tm, tn).
    acc = jnp.dot(x_ref[...], w_ref[...],
                  preferred_element_type=jnp.float32)     # MXU, f32 accumulate
    o_ref[...] = (acc + b_ref[...]).astype(o_ref.dtype)   # f32 epilogue, then cast


def _pick_tiles(B, H, E_pad, x_bytes, w_bytes, out_bytes,
                block_b, block_n, vmem_budget_bytes):
    # Out-feature tile: lane-dense multiple of 128; 256 fills the full 2x256
    # MXU width on v6e/v7x when E_pad is large enough.
    tn = min(_round_up(block_n, 128), E_pad)

    # Batch tile: 2*tm*H*xB + 2*tm*tn*oB (double-buffered x & out tiles)
    #           + 2*H*tn*wB (double-buffered weight tile) + bias <= budget.
    fixed = 2 * H * tn * w_bytes + 2 * tn * 4
    per_row = 2 * (H * x_bytes + tn * out_bytes)
    tm = max(8, (vmem_budget_bytes - fixed) // max(per_row, 1))
    tm = min(tm, 1024)                  # per-step overhead amortized by ~1024 rows
    if block_b is not None:
        tm = min(tm, block_b)
    if tm >= B:
        tm = B                          # full-extent block is always legal
    else:
        tm = max(8, (tm // 8) * 8)      # keep the batch tile sublane-aligned
    return int(tm), int(tn)


@functools.partial(
    jax.jit,
    static_argnames=("out_features", "block_b", "block_n", "vmem_budget_bytes"))
def linear_norm(x, w_t, b2d, *, out_features=None, block_b=None, block_n=256,
                vmem_budget_bytes=16 * 1024 * 1024):
    """y = x @ weight.T + bias  (torch.nn.Linear forward semantics).

    x:   (..., lstm_hidden); pass bf16 activations for the bf16 MXU path.
    w_t: (lstm_hidden, E_pad) from prepare_linear_params
    b2d: (1, E_pad) float32   from prepare_linear_params
    out_features: if given, trim padded columns back to emb_dim (see TODO below).
    """
    H, E_pad = w_t.shape
    lead = x.shape[:-1]
    x2 = x.reshape(-1, H)
    B = x2.shape[0]
    out_dtype = x.dtype

    tm, tn = _pick_tiles(B, H, E_pad,
                         x2.dtype.itemsize, w_t.dtype.itemsize,
                         jnp.dtype(out_dtype).itemsize,
                         block_b, block_n, vmem_budget_bytes)

    # Out-features innermost: x tile stays resident while weight tiles stream.
    grid = (pl.cdiv(B, tm), pl.cdiv(E_pad, tn))

    out = pl.pallas_call(
        _linear_kernel,
        out_shape=jax.ShapeDtypeStruct((B, E_pad), out_dtype),
        grid=grid,
        in_specs=[
            pl.BlockSpec((tm, H), lambda i, j: (i, 0)),    # x: tiled over batch
            pl.BlockSpec((H, tn), lambda i, j: (0, j)),    # weight: tiled over E
            pl.BlockSpec((1, tn), lambda i, j: (0, j)),    # bias: tiled over E
        ],
        out_specs=pl.BlockSpec((tm, tn), lambda i, j: (i, j)),
        compiler_params=pltpu.CompilerParams(
            dimension_semantics=("parallel", "parallel"),  # megacore / 2-TC split
            vmem_limit_bytes=32 * 1024 * 1024),
    )(x2, w_t, b2d)

    if out_features is not None and out_features != E_pad:
        # TODO(synk): in production keep E_pad as the canonical downstream
        # activation width (or fuse this slice into the consumer) — the slice
        # is an extra full HBM pass over the output of a launch-bound kernel.
        out = out[:, :out_features]
    return out.reshape(*lead, out.shape[-1])


if __name__ == "__main__":
    # Small shapes consistent with the module: lstm_hidden=32, emb_dim=16, batch=8.
    lstm_hidden, emb_dim, batch = 32, 16, 8

    key = jax.random.PRNGKey(0)
    kx, kw, kb = jax.random.split(key, 3)

    # Deterministic params mirroring nn.Linear's uniform(-1/sqrt(in), 1/sqrt(in)).
    bound = 1.0 / (lstm_hidden ** 0.5)
    weight = jax.random.uniform(kw, (emb_dim, lstm_hidden), jnp.float32,
                                minval=-bound, maxval=bound)
    bias = jax.random.uniform(kb, (emb_dim,), jnp.float32,
                              minval=-bound, maxval=bound)
    x = jax.random.normal(kx, (batch, lstm_hidden), jnp.float32)

    ref = x @ weight.T + bias

    # f32 path (exact vs reference). Parameter prep happens once, outside jit.
    w_f32, b_f32 = prepare_linear_params(weight, bias)
    out = jax.block_until_ready(linear_norm(x, w_f32, b_f32, out_features=emb_dim))
    assert out.shape == (batch, emb_dim)
    assert jnp.allclose(out, ref, atol=1e-5, rtol=1e-5)

    # bf16 operand path (v6e/v7x MXU, halved DMA on v5e); accumulation stays f32.
    # In production x arrives bf16 from upstream; the cast here is test-only.
    w_bf16, b_bf16 = prepare_linear_params(weight, bias, param_dtype=jnp.bfloat16)
    x_bf16 = x.astype(jnp.bfloat16)
    out_bf16 = jax.block_until_ready(
        linear_norm(x_bf16, w_bf16, b_bf16, out_features=emb_dim))
    assert out_bf16.shape == (batch, emb_dim)
    assert jnp.allclose(out_bf16.astype(jnp.float32), ref, atol=5e-2, rtol=5e-2)

    print("KERNEL_OK")
</pallas_src>

<mosaic_0001>
module attributes {stable_mosaic.version = 11 : i64} {
  func.func @_linear_kernel(%arg0: i32, %arg1: i32, %arg2: memref<8x32xf32, #tpu.memory_space<vmem>>, %arg3: memref<32x128xf32, #tpu.memory_space<vmem>>, %arg4: memref<1x128xf32, #tpu.memory_space<vmem>>, %arg5: memref<8x128xf32, #tpu.memory_space<vmem>>) attributes {dimension_semantics = [#tpu.dimension_semantics<parallel>, #tpu.dimension_semantics<parallel>], iteration_bounds = array<i64: 1, 1>, scalar_prefetch = 0 : i64, scratch_operands = 0 : i64, tpu.core_type = #tpu.core_type<tc>, window_params = [{transform_indices = @transform_0, window_bounds = array<i64: 8, 32>}, {transform_indices = @transform_1, window_bounds = array<i64: 32, 128>}, {transform_indices = @transform_2, window_bounds = array<i64: 1, 128>}, {transform_indices = @transform_3, window_bounds = array<i64: 8, 128>}]} {
    %c0 = arith.constant 0 : index
    %c0_0 = arith.constant 0 : index
    %0 = vector.load %arg2[%c0, %c0_0] : memref<8x32xf32, #tpu.memory_space<vmem>>, vector<8x32xf32>
    %c0_1 = arith.constant 0 : index
    %c0_2 = arith.constant 0 : index
    %1 = vector.load %arg3[%c0_1, %c0_2] : memref<32x128xf32, #tpu.memory_space<vmem>>, vector<32x128xf32>
    %cst = arith.constant dense<0.000000e+00> : vector<8x128xf32>
    %2 = tpu.matmul %0, %1, %cst {dimension_numbers = #tpu.dot_dimension_numbers<[1], [0], [0], [1], [0, 0, 1, 1], [], []>} : vector<8x32xf32>, vector<32x128xf32>, vector<8x128xf32> -> vector<8x128xf32>
    %c0_3 = arith.constant 0 : index
    %c0_4 = arith.constant 0 : index
    %3 = vector.load %arg4[%c0_3, %c0_4] : memref<1x128xf32, #tpu.memory_space<vmem>>, vector<1x128xf32>
    %4 = vector.broadcast %3 : vector<1x128xf32> to vector<8x128xf32>
    %5 = arith.addf %2, %4 : vector<8x128xf32>
    %c0_5 = arith.constant 0 : index
    %c0_6 = arith.constant 0 : index
    %6 = vector.load %arg5[%c0_5, %c0_6] : memref<8x128xf32, #tpu.memory_space<vmem>>, vector<8x128xf32>
    tpu.vector_store %arg5[%c0_5, %c0_6], %5 {strides = array<i32>} : memref<8x128xf32, #tpu.memory_space<vmem>>, vector<8x128xf32>,
    return
  }
  func.func @transform_0(%arg0: i32, %arg1: i32) -> (i32, i32) {
    %c0_i32 = arith.constant 0 : i32
    %c0_i32_0 = arith.constant 0 : i32
    return %arg0, %c0_i32 : i32, i32
  }
  func.func @transform_1(%arg0: i32, %arg1: i32) -> (i32, i32) {
    %c0_i32 = arith.constant 0 : i32
    %c0_i32_0 = arith.constant 0 : i32
    return %c0_i32, %arg1 : i32, i32
  }
  func.func @transform_2(%arg0: i32, %arg1: i32) -> (i32, i32) {
    %c0_i32 = arith.constant 0 : i32
    %c0_i32_0 = arith.constant 0 : i32
    return %c0_i32, %arg1 : i32, i32
  }
  func.func @transform_3(%arg0: i32, %arg1: i32) -> (i32, i32) {
    %c0_i32 = arith.constant 0 : i32
    return %arg0, %arg1 : i32, i32
  }
}

</mosaic_0001>

<llo_original>
// kernel: linear_norm.1
$region0: #{linear_norm.1}
  #allocation0 [shape = 'u32[]', space=smem, size = 0x4, offset = 0x4, fixed_abs, tag = 'smem constant byte address 0x4 - core index']
  #allocation1 [shape = 'u32[72,128]{1,0:T(1,128)}', space=vmem, size = 0x9000, scoped, tag = 'internal scratch']
  %s0 = inlined_call_operand.hbm [shape: f32[8,32], index: 0, kind: input, shape index: {}]
  %s1 = inlined_call_operand.hbm [shape: f32[32,128], index: 1, kind: input, shape index: {}]
  %s2 = inlined_call_operand.vmem [shape: f32[1,128], index: 2, kind: input, shape index: {}]
  %s3 = inlined_call_operand.hbm [shape: f32[8,128], index: 3, kind: output, shape index: {}]
  %s4 = sld [smem:[#allocation0]]
  $region30: #{linear_norm.1} parent=0
    _
  %s6 = ssub.s32 1, %s4
  %s7 = scalar_select 0, %s6, %s4
  $region1: #{linear_norm.1} parent=0
    #allocation2 [shape = 'u8[4096]{0}', space=vmem, size = 0x1000, scoped, tag = 'input window, operand 0, single buffered']
    #allocation3 [shape = 's32[1]{0}', space=sflag, size = 0x4, scoped, tag = 'scoped memory for linear_norm.1']
    #allocation4 [shape = 's32[1]{0}', space=sflag, size = 0x4, scoped, tag = 'scoped memory for linear_norm.1']
    #allocation5 [shape = 'u8[16384]{0}', space=vmem, size = 0x4000, scoped, tag = 'input window, operand 1, single buffered']
    #allocation6 [shape = 's32[1]{0}', space=sflag, size = 0x4, scoped, tag = 'scoped memory for linear_norm.1']
    #allocation7 [shape = 'u8[4096]{0}', space=vmem, size = 0x1000, scoped, tag = 'output window, operand 0, single buffered']
    %8 = vsyncpa [#allocation3], 0
    %9 = vsyncpa [#allocation6], 0
    %10 = vsyncpa [#allocation4], 0
    // Predicated region
    $region2: #{linear_norm.1} parent=1 // pred_check
      _
    $region3: #{linear_norm.1} parent=1 // pred_check_branch
      %12 = sbr.rel (0) target = $region5
    $region4: #{linear_norm.1} parent=1 // pred_region
      %14 = vsyncadd [#allocation3], 0
      %s16 = sshll.u32 %s0, 4
      %s17 = int_to_ptr.hbm [resolvable:$true] %s16
      %s18 = sshll.u32 [#allocation2], 4
      %s19 = int_to_ptr.vmem [resolvable:$true] %s18
      %21 = dma.hbm_to_vmem [thread:$0]  %s17, 128, %s19, [#allocation3]
    $region5: #{linear_norm.1} parent=1 // pred_fallthru
      _
    // Predicated region
    $region6: #{linear_norm.1} parent=1 // pred_check
      _
    $region7: #{linear_norm.1} parent=1 // pred_check_branch
      %23 = sbr.rel (0) target = $region9
    $region8: #{linear_norm.1} parent=1 // pred_region
      %25 = vsyncadd [#allocation6], 0
      %s26 = sshll.u32 %s1, 4
      %s27 = int_to_ptr.hbm [resolvable:$true] %s26
      %s28 = sshll.u32 [#allocation5], 4
      %s29 = int_to_ptr.vmem [resolvable:$true] %s28
      %34 = dma.hbm_to_vmem [thread:$0]  %s27, 512, %s29, [#allocation6], 128, 128, 8
    $region9: #{linear_norm.1} parent=1 // pred_fallthru
      _
    // Predicated region
    $region10: #{linear_norm.1} parent=1 // pred_check
      _
    $region11: #{linear_norm.1} parent=1 // pred_check_branch
      %36 = sbr.rel (0) target = $region13
    $region12: #{linear_norm.1} parent=1 // pred_region
      _
    $region13: #{linear_norm.1} parent=1 // pred_fallthru
      _
    // Predicated region
    $region14: #{linear_norm.1} parent=1 // pred_check
      _
    $region15: #{linear_norm.1} parent=1 // pred_check_branch
      %38 = sbr.rel (0) target = $region17
    $region16: #{linear_norm.1} parent=1 // pred_region
      %40 = dma.done [#allocation3], 128
    $region17: #{linear_norm.1} parent=1 // pred_fallthru
      _
    // Predicated region
    $region18: #{linear_norm.1} parent=1 // pred_check
      _
    $region19: #{linear_norm.1} parent=1 // pred_check_branch
      %42 = sbr.rel (0) target = $region21
    $region20: #{linear_norm.1} parent=1 // pred_region
      %44 = dma.done [#allocation6], 512
    $region21: #{linear_norm.1} parent=1 // pred_fallthru
      _
    %v45 = vld [vmem:[#allocation2] sm:$0xff]
    %v46 = vld [vmem:[#allocation5] sm:$0xff]
    %v47 = vld [vmem:[#allocation5 + $0x8] sm:$0xff]
    %v48 = vld [vmem:[#allocation5 + $0x10] sm:$0xff]
    %v49 = vld [vmem:[#allocation5 + $0x18] sm:$0xff]
    %v50 = vld [vmem:[%s2] sm:$0x1]
    %v52 = vperm.slane %v50, 0
    %vm54 = vcmask 261120
    %v56 = vsel %vm54, %v45, 0
    %58 = vmatpush.msra.mxu0 0.0
    %59 = vmatpush.msra.mxu0 0.0
    %60 = vmatpush.msra.mxu0 0.0
    %61 = vmatpush.msra.mxu0 0.0
    %62 = vmatpush.msra.mxu0 0.0
    %63 = vmatpush.msra.mxu0 0.0
    %64 = vmatpush.msra.mxu0 0.0
    %65 = vmatpush.msra.mxu0 0.0
    %66 = vmatpush.msra.mxu0 0.0
    %67 = vmatpush.msra.mxu0 0.0
    %68 = vmatpush.msra.mxu0 0.0
    %69 = vmatpush.msra.mxu0 0.0
    %70 = vmatpush.msra.mxu0 %v49
    %71 = vmatpush.msra.mxu0 %v48
    %72 = vmatpush.msra.mxu0 %v47
    %73 = vmatpush.msra.mxu0 %v46
    %74 = vmatmul.f32.gmra.mxu0 %v56
    %v75 = vpop.f32.mrf.mxu0
    %v76 = vadd.f32 %v52, %v75
    %77 = vdwg.mxu0
    %78 = vst [vmem:[#allocation7] sm:$0xff] %v76
    // Predicated region
    $region22: #{linear_norm.1} parent=1 // pred_check
      _
    $region23: #{linear_norm.1} parent=1 // pred_check_branch
      %80 = sbr.rel (0) target = $region25
    $region24: #{linear_norm.1} parent=1 // pred_region
      %82 = vsyncadd [#allocation4], 0
      %s84 = sshll.u32 [#allocation7], 4
      %s85 = int_to_ptr.vmem [resolvable:$true] %s84
      %s86 = sshll.u32 %s3, 4
      %s87 = int_to_ptr.hbm [resolvable:$true] %s86
      %89 = dma.vmem_to_hbm [thread:$0]  %s85, 128, %s87, [#allocation4]
    $region25: #{linear_norm.1} parent=1 // pred_fallthru
      _
    // Predicated region
    $region26: #{linear_norm.1} parent=1 // pred_check
      _
    $region27: #{linear_norm.1} parent=1 // pred_check_branch
      %91 = sbr.rel (0) target = $region29
    $region28: #{linear_norm.1} parent=1 // pred_region
      %93 = dma.done [#allocation4], 128
    $region29: #{linear_norm.1} parent=1 // pred_fallthru
      _
    %94 = vsyncpa [#allocation3], 1
    %95 = vsyncpa [#allocation6], 1
    %96 = vsyncpa [#allocation4], 1

</llo_original>
